<compile_context>
chip_gen: v7x
topology: tpu7x:2x2x1
jax: 0.10.0
libtpu: 0.0.40
codegen_flags: <defaults>
</compile_context>

<pallas_src>
import jax
import jax.numpy as jnp
from jax.experimental import pallas as pl
from jax.experimental.pallas import tpu as pltpu


def _make_sep_loss_kernel(delta: float, num_kp: int, batch_size: int):
    inv_norm = 1.0 / float(num_kp * batch_size)

    def kernel(kp_ref, out_ref):
        x = kp_ref[...].astype(jnp.float32)                    # (B, N, D)
        B, N, _ = x.shape                                      # static

        # Pairwise squared distances via the Gram identity:
        #   ||xi - xj||^2 = ||xi||^2 + ||xj||^2 - 2 <xi, xj>
        # The O(N^2 * D) inner products go to the MXU; no (N, N, D) intermediate.
        sq = jnp.sum(x * x, axis=-1)                           # (B, N)
        gram = jnp.einsum("bnd,bmd->bnm", x, x,
                          preferred_element_type=jnp.float32)  # (B, N, N)
        lensqr = sq[:, :, None] + sq[:, None, :] - 2.0 * gram  # (B, N, N)
        lensqr = jnp.maximum(lensqr, 0.0)                      # numerical floor (true lensqr >= 0)

        hinge = jnp.maximum(jnp.float32(delta) - lensqr, 0.0)  # (B, N, N)

        # Reduce as a 2-D slab: lane reduce over the pair axis, then sublane reduce.
        hinge2d = hinge.reshape(B * N, N)                      # merge leading dims (free)
        partial = jnp.sum(hinge2d, axis=1, keepdims=True)      # (B*N, 1)
        total = jnp.sum(partial, axis=0, keepdims=True)        # (1, 1)

        out_ref[...] = total * jnp.float32(inv_norm)           # single final store

    return kernel


def separation_loss(kp, delta, batch_size):
    """kp: (B, R, D) float32 with D == R (module's repeat/reshape quirk);
    delta, batch_size: Python/host scalars."""
    B, N, D = kp.shape
    assert D == N, "module uses kp.shape[2] as num_kp; repeat trick needs D == num_kp"

    kp = kp.astype(jnp.float32)
    kernel = _make_sep_loss_kernel(float(delta), N, int(batch_size))

    cost = pl.CostEstimate(
        flops=2 * B * N * N * D + 6 * B * N * N,   # Gram matmul + elementwise hinge
        transcendentals=0,
        bytes_accessed=B * N * D * 4 + 4,
    )

    out = pl.pallas_call(
        kernel,
        out_shape=jax.ShapeDtypeStruct((1, 1), jnp.float32),
        grid=(1,),                                  # whole problem in one grid step
        in_specs=[pl.BlockSpec((B, N, D), lambda i: (0, 0, 0))],
        out_specs=pl.BlockSpec((1, 1), lambda i: (0, 0)),
        compiler_params=pltpu.CompilerParams(
            dimension_semantics=("arbitrary",),
        ),
        cost_estimate=cost,
    )(kp)
    return out[0, 0]


if __name__ == "__main__":
    key = jax.random.PRNGKey(0)
    B, N = 2, 8                       # batch=2, num_kp=8 (coord dim forced == num_kp)
    kp = jax.random.normal(key, (B, N, N), dtype=jnp.float32) * 0.5
    delta = 0.05
    batch_size = B                    # opt.batch_size

    loss = separation_loss(kp, delta, batch_size)
    jax.block_until_ready(loss)

    # pure-JAX reference mirroring the torch code exactly
    num_kp = kp.shape[2]
    t1 = jnp.tile(kp, (1, num_kp, 1))
    t2 = jnp.reshape(jnp.tile(kp, (1, 1, num_kp)), t1.shape)
    lensqr = jnp.linalg.norm(t1 - t2, axis=2) ** 2
    ref = jnp.sum(jnp.maximum(-lensqr + delta, 0.0)) / (num_kp * batch_size)

    assert jnp.allclose(loss, ref, rtol=1e-4, atol=1e-5), (loss, ref)
    print("KERNEL_OK")
</pallas_src>

<mosaic_0001>
module attributes {stable_mosaic.version = 11 : i64} {
  func.func @kernel(%arg0: i32, %arg1: memref<2x8x8xf32, #tpu.memory_space<vmem>>, %arg2: memref<1x1xf32, #tpu.memory_space<vmem>>) attributes {dimension_semantics = [#tpu.dimension_semantics<arbitrary>], iteration_bounds = array<i64: 1>, scalar_prefetch = 0 : i64, scratch_operands = 0 : i64, tpu.core_type = #tpu.core_type<tc>, window_params = [{pipeline_mode = #tpu.pipeline_mode<synchronous>, transform_indices = @transform_0, window_bounds = array<i64: 2, 8, 8>}, {pipeline_mode = #tpu.pipeline_mode<synchronous>, transform_indices = @transform_1, window_bounds = array<i64: 1, 1>}]} {
    %c0 = arith.constant 0 : index
    %c0_0 = arith.constant 0 : index
    %c0_1 = arith.constant 0 : index
    %0 = vector.load %arg1[%c0, %c0_0, %c0_1] : memref<2x8x8xf32, #tpu.memory_space<vmem>>, vector<2x8x8xf32>
    %1 = arith.mulf %0, %0 : vector<2x8x8xf32>
    %cst = arith.constant dense<0.000000e+00> : vector<2x8xf32>
    %2 = vector.multi_reduction <add>, %1, %cst [2] : vector<2x8x8xf32> to vector<2x8xf32>
    "tpu.trace_start"() <{level = 10 : i32, message = "bnd,bmd->bnm"}> : () -> ()
    %cst_2 = arith.constant dense<0.000000e+00> : vector<2x8x8xf32>
    %3 = tpu.matmul %0, %0, %cst_2 {dimension_numbers = #tpu.dot_dimension_numbers<[2], [2], [1], [1], [0, 0, 0, 1, 1, 1], [0], [0]>} : vector<2x8x8xf32>, vector<2x8x8xf32>, vector<2x8x8xf32> -> vector<2x8x8xf32>
    "tpu.trace_stop"() : () -> ()
    %4 = vector.shape_cast %2 : vector<2x8xf32> to vector<2x8x1xf32>
    %5 = vector.shape_cast %2 : vector<2x8xf32> to vector<2x1x8xf32>
    %6 = vector.broadcast %4 : vector<2x8x1xf32> to vector<2x8x8xf32>
    %7 = vector.broadcast %5 : vector<2x1x8xf32> to vector<2x8x8xf32>
    %8 = arith.addf %6, %7 : vector<2x8x8xf32>
    %cst_3 = arith.constant 2.000000e+00 : f32
    %9 = vector.broadcast %cst_3 : f32 to vector<2x8x8xf32>
    %10 = arith.mulf %9, %3 : vector<2x8x8xf32>
    %11 = arith.subf %8, %10 : vector<2x8x8xf32>
    %cst_4 = arith.constant 0.000000e+00 : f32
    %12 = vector.broadcast %cst_4 : f32 to vector<2x8x8xf32>
    %13 = arith.maximumf %11, %12 : vector<2x8x8xf32>
    %cst_5 = arith.constant 5.000000e-02 : f32
    %14 = vector.broadcast %cst_5 : f32 to vector<2x8x8xf32>
    %15 = arith.subf %14, %13 : vector<2x8x8xf32>
    %cst_6 = arith.constant 0.000000e+00 : f32
    %16 = vector.broadcast %cst_6 : f32 to vector<2x8x8xf32>
    %17 = arith.maximumf %15, %16 : vector<2x8x8xf32>
    %18 = vector.shape_cast %17 : vector<2x8x8xf32> to vector<16x8xf32>
    %cst_7 = arith.constant dense<0.000000e+00> : vector<16xf32>
    %19 = vector.multi_reduction <add>, %18, %cst_7 [1] : vector<16x8xf32> to vector<16xf32>
    %20 = vector.shape_cast %19 : vector<16xf32> to vector<16x1xf32>
    %cst_8 = arith.constant dense<0.000000e+00> : vector<1xf32>
    %21 = vector.multi_reduction <add>, %20, %cst_8 [0] : vector<16x1xf32> to vector<1xf32>
    %22 = vector.shape_cast %21 : vector<1xf32> to vector<1x1xf32>
    %cst_9 = arith.constant 6.250000e-02 : f32
    %23 = vector.broadcast %cst_9 : f32 to vector<1x1xf32>
    %24 = arith.mulf %22, %23 : vector<1x1xf32>
    %c0_10 = arith.constant 0 : index
    %c0_11 = arith.constant 0 : index
    %25 = vector.load %arg2[%c0_10, %c0_11] : memref<1x1xf32, #tpu.memory_space<vmem>>, vector<1x1xf32>
    tpu.vector_store %arg2[%c0_10, %c0_11], %24 {strides = array<i32>} : memref<1x1xf32, #tpu.memory_space<vmem>>, vector<1x1xf32>,
    return
  }
  func.func @transform_0(%arg0: i32) -> (i32, i32, i32) {
    %c0_i32 = arith.constant 0 : i32
    %c0_i32_0 = arith.constant 0 : i32
    %c0_i32_1 = arith.constant 0 : i32
    %c0_i32_2 = arith.constant 0 : i32
    return %c0_i32, %c0_i32_0, %c0_i32_1 : i32, i32, i32
  }
  func.func @transform_1(%arg0: i32) -> (i32, i32) {
    %c0_i32 = arith.constant 0 : i32
    %c0_i32_0 = arith.constant 0 : i32
    %c0_i32_1 = arith.constant 0 : i32
    return %c0_i32, %c0_i32_0 : i32, i32
  }
}

</mosaic_0001>

<llo_original>
// kernel: tpu_custom_call.1
$region0: #{tpu_custom_call.1}
  #allocation0 [shape = 'u32[]', space=smem, size = 0x4, offset = 0x4, fixed_abs, tag = 'smem constant byte address 0x4 - core index']
  #allocation1 [shape = 'u32[144,128]{1,0:T(1,128)}', space=vmem, size = 0x12000, scoped, tag = 'internal scratch']
  %s0 = inlined_call_operand.hbm [shape: f32[2,8,8], index: 0, kind: input, shape index: {}]
  %s1 = inlined_call_operand.hbm [shape: f32[1,1], index: 1, kind: output, shape index: {}]
  %s2 = sld [smem:[#allocation0]]
  $region18: #{tpu_custom_call.1} parent=0
    _
  %s4 = ssub.s32 1, %s2
  %s5 = scalar_select 0, %s4, %s2
  $region1: #{tpu_custom_call.1} parent=0
    #allocation2 [shape = 'u8[8192]{0}', space=vmem, size = 0x2000, scoped, tag = 'input window, operand 0, single buffered']
    #allocation3 [shape = 's32[1]{0}', space=sflag, size = 0x4, scoped, tag = 'scoped memory for tpu_custom_call.1']
    #allocation4 [shape = 's32[1]{0}', space=sflag, size = 0x4, scoped, tag = 'scoped memory for tpu_custom_call.1']
    #allocation5 [shape = 'u8[512]{0}', space=vmem, size = 0x400, scoped, tag = 'output window, operand 0, single buffered']
    %6 = vsyncpa [#allocation3], 0
    %7 = vsyncpa [#allocation4], 0
    // Predicated region
    $region2: #{tpu_custom_call.1} parent=1 // pred_check
      _
    $region3: #{tpu_custom_call.1} parent=1 // pred_check_branch
      %9 = sbr.rel (0) target = $region5
    $region4: #{tpu_custom_call.1} parent=1 // pred_region
      %s11 = ssub.s32 256, 256
      %12 = vsyncadd [#allocation3], %s11
      %s13 = sshll.u32 [#allocation2], 4
      %s14 = int_to_ptr.vmem [resolvable:$true] %s13
      %19 = dma.hbm_to_vmem [thread:$0]  %s0, 256, %s14, [#allocation3], 128, 128, 8
    $region5: #{tpu_custom_call.1} parent=1 // pred_fallthru
      _
    // Predicated region
    $region6: #{tpu_custom_call.1} parent=1 // pred_check
      _
    $region7: #{tpu_custom_call.1} parent=1 // pred_check_branch
      %21 = sbr.rel (0) target = $region9
    $region8: #{tpu_custom_call.1} parent=1 // pred_region
      %22 = dma.done [#allocation3], 256
    $region9: #{tpu_custom_call.1} parent=1 // pred_fallthru
      _
    %v23 = vld [vmem:[#allocation2] sm:$0xff]
    %v24 = vld [vmem:[#allocation2 + $0x8] sm:$0xff]
    %v25 = vmul.f32 %v23, %v23
    %v26 = vmul.f32 %v24, %v24
    %vm27 = vcmask 64512
    %v28 = vsel %vm27, %v25, 0.0
    %29 = vadd.xlane.f32.xlu0 %v28
    %v30 = vpop.xlane.xlu0 %29
    %v31 = vsel %vm27, %v26, 0.0
    %32 = vadd.xlane.f32.xlu0 %v31
    %v33 = vpop.xlane.xlu0 %32
    %v35 = vsel %vm27, %v23, 0
    %37 = vmatprep.subr.mxu0 0.0
    %38 = vmatpush1.xpose.msra.mxu0 %v35
    %39 = vmatprep.subr.mxu0 0.0
    %40 = vmatpush1.xpose.msra.mxu0 0.0
    %41 = vmatprep.subr.mxu0 0.0
    %42 = vmatpush1.xpose.msra.mxu0 0.0
    %43 = vmatprep.subr.mxu0 0.0
    %44 = vmatpush1.xpose.msra.mxu0 0.0
    %45 = vmatprep.subr.mxu0 0.0
    %46 = vmatpush1.xpose.msra.mxu0 0.0
    %47 = vmatprep.subr.mxu0 0.0
    %48 = vmatpush1.xpose.msra.mxu0 0.0
    %49 = vmatprep.subr.mxu0 0.0
    %50 = vmatpush1.xpose.msra.mxu0 0.0
    %51 = vmatprep.subr.mxu0 0.0
    %52 = vmatpush1.xpose.msra.mxu0 0.0
    %53 = vmatprep.subr.mxu0 0.0
    %54 = vmatpush1.xpose.msra.mxu0 0.0
    %55 = vmatprep.subr.mxu0 0.0
    %56 = vmatpush1.xpose.msra.mxu0 0.0
    %57 = vmatprep.subr.mxu0 0.0
    %58 = vmatpush1.xpose.msra.mxu0 0.0
    %59 = vmatprep.subr.mxu0 0.0
    %60 = vmatpush1.xpose.msra.mxu0 0.0
    %61 = vmatprep.subr.mxu0 0.0
    %62 = vmatpush1.xpose.msra.mxu0 0.0
    %63 = vmatprep.subr.mxu0 0.0
    %64 = vmatpush1.xpose.msra.mxu0 0.0
    %65 = vmatprep.subr.mxu0 0.0
    %66 = vmatpush1.xpose.msra.mxu0 0.0
    %67 = vmatprep.subr.mxu0 0.0
    %68 = vmatpush1.xpose.msra.mxu0 0.0
    %69 = vmatprep.subr.mxu0 0.0
    %70 = vmatpush1.xpose.msra.mxu0 0.0
    %71 = vmatprep.subr.mxu0 0.0
    %72 = vmatpush1.xpose.msra.mxu0 0.0
    %73 = vmatprep.subr.mxu0 0.0
    %74 = vmatpush1.xpose.msra.mxu0 0.0
    %75 = vmatprep.subr.mxu0 0.0
    %76 = vmatpush1.xpose.msra.mxu0 0.0
    %77 = vmatprep.subr.mxu0 0.0
    %78 = vmatpush1.xpose.msra.mxu0 0.0
    %79 = vmatprep.subr.mxu0 0.0
    %80 = vmatpush1.xpose.msra.mxu0 0.0
    %81 = vmatprep.subr.mxu0 0.0
    %82 = vmatpush1.xpose.msra.mxu0 0.0
    %83 = vmatprep.subr.mxu0 0.0
    %84 = vmatpush1.xpose.msra.mxu0 0.0
    %85 = vmatprep.subr.mxu0 0.0
    %86 = vmatpush1.xpose.msra.mxu0 0.0
    %87 = vmatprep.subr.mxu0 0.0
    %88 = vmatpush1.xpose.msra.mxu0 0.0
    %89 = vmatprep.subr.mxu0 0.0
    %90 = vmatpush1.xpose.msra.mxu0 0.0
    %91 = vmatprep.subr.mxu0 0.0
    %92 = vmatpush1.xpose.msra.mxu0 0.0
    %93 = vmatprep.subr.mxu0 0.0
    %94 = vmatpush1.xpose.msra.mxu0 0.0
    %95 = vmatprep.subr.mxu0 0.0
    %96 = vmatpush1.xpose.msra.mxu0 0.0
    %97 = vmatprep.subr.mxu0 0.0
    %98 = vmatpush1.xpose.msra.mxu0 0.0
    %99 = vmatprep.subr.mxu0 0.0
    %100 = vmatpush1.xpose.msra.mxu0 0.0
    %101 = vmatprep.mubr.f32.mxu0 0.0
    %102 = vmatmul.mubr.f32.gmra.mrb[0].mxu0 %v35
    %v103 = vpop.f32.mrb[0].mxu0
    %v104 = vadd.f32 0.0, %v103
    %v105 = vpop.f32.mrb[0].mxu0
    %106 = vdwg.mxu0
    %v108 = vsel %vm27, %v24, 0
    %110 = vmatprep.subr.mxu0 0.0
    %111 = vmatpush1.xpose.msra.mxu0 %v108
    %112 = vmatprep.subr.mxu0 0.0
    %113 = vmatpush1.xpose.msra.mxu0 0.0
    %114 = vmatprep.subr.mxu0 0.0
    %115 = vmatpush1.xpose.msra.mxu0 0.0
    %116 = vmatprep.subr.mxu0 0.0
    %117 = vmatpush1.xpose.msra.mxu0 0.0
    %118 = vmatprep.subr.mxu0 0.0
    %119 = vmatpush1.xpose.msra.mxu0 0.0
    %120 = vmatprep.subr.mxu0 0.0
    %121 = vmatpush1.xpose.msra.mxu0 0.0
    %122 = vmatprep.subr.mxu0 0.0
    %123 = vmatpush1.xpose.msra.mxu0 0.0
    %124 = vmatprep.subr.mxu0 0.0
    %125 = vmatpush1.xpose.msra.mxu0 0.0
    %126 = vmatprep.subr.mxu0 0.0
    %127 = vmatpush1.xpose.msra.mxu0 0.0
    %128 = vmatprep.subr.mxu0 0.0
    %129 = vmatpush1.xpose.msra.mxu0 0.0
    %130 = vmatprep.subr.mxu0 0.0
    %131 = vmatpush1.xpose.msra.mxu0 0.0
    %132 = vmatprep.subr.mxu0 0.0
    %133 = vmatpush1.xpose.msra.mxu0 0.0
    %134 = vmatprep.subr.mxu0 0.0
    %135 = vmatpush1.xpose.msra.mxu0 0.0
    %136 = vmatprep.subr.mxu0 0.0
    %137 = vmatpush1.xpose.msra.mxu0 0.0
    %138 = vmatprep.subr.mxu0 0.0
    %139 = vmatpush1.xpose.msra.mxu0 0.0
    %140 = vmatprep.subr.mxu0 0.0
    %141 = vmatpush1.xpose.msra.mxu0 0.0
    %142 = vmatprep.subr.mxu0 0.0
    %143 = vmatpush1.xpose.msra.mxu0 0.0
    %144 = vmatprep.subr.mxu0 0.0
    %145 = vmatpush1.xpose.msra.mxu0 0.0
    %146 = vmatprep.subr.mxu0 0.0
    %147 = vmatpush1.xpose.msra.mxu0 0.0
    %148 = vmatprep.subr.mxu0 0.0
    %149 = vmatpush1.xpose.msra.mxu0 0.0
    %150 = vmatprep.subr.mxu0 0.0
    %151 = vmatpush1.xpose.msra.mxu0 0.0
    %152 = vmatprep.subr.mxu0 0.0
    %153 = vmatpush1.xpose.msra.mxu0 0.0
    %154 = vmatprep.subr.mxu0 0.0
    %155 = vmatpush1.xpose.msra.mxu0 0.0
    %156 = vmatprep.subr.mxu0 0.0
    %157 = vmatpush1.xpose.msra.mxu0 0.0
    %158 = vmatprep.subr.mxu0 0.0
    %159 = vmatpush1.xpose.msra.mxu0 0.0
    %160 = vmatprep.subr.mxu0 0.0
    %161 = vmatpush1.xpose.msra.mxu0 0.0
    %162 = vmatprep.subr.mxu0 0.0
    %163 = vmatpush1.xpose.msra.mxu0 0.0
    %164 = vmatprep.subr.mxu0 0.0
    %165 = vmatpush1.xpose.msra.mxu0 0.0
    %166 = vmatprep.subr.mxu0 0.0
    %167 = vmatpush1.xpose.msra.mxu0 0.0
    %168 = vmatprep.subr.mxu0 0.0
    %169 = vmatpush1.xpose.msra.mxu0 0.0
    %170 = vmatprep.subr.mxu0 0.0
    %171 = vmatpush1.xpose.msra.mxu0 0.0
    %172 = vmatprep.subr.mxu0 0.0
    %173 = vmatpush1.xpose.msra.mxu0 0.0
    %174 = vmatprep.mubr.f32.mxu0 0.0
    %175 = vmatmul.mubr.f32.gmra.mrb[0].mxu0 %v108
    %v176 = vpop.f32.mrb[0].mxu0
    %v177 = vadd.f32 0.0, %v176
    %v178 = vpop.f32.mrb[0].mxu0
    %179 = vdwg.mxu0
    %v182 = vlaneseq
    %v183 = vand.u32 %v182, 127
    %v184 = vlaneseq
    %v185 = vshrl.u32 %v184, 7
    %v186 = vsub.s32 %v183, %v185
    %v187 = vrot.slane %v30, %v186
    %v188 = vlaneseq
    %v189 = vshrl.u32 %v188, 7
    %v190 = vsub.s32 %v183, %v189
    %v191 = vrot.slane %v33, %v190
    %vm192 = vcmask 1042434
    %v193 = vsel %vm192, %v187, %v187
    %vm194 = vcmask 1043459
    %v195 = vsel %vm194, %v187, %v193
    %vm196 = vcmask 1044484
    %v197 = vsel %vm196, %v187, %v195
    %vm198 = vcmask 1045509
    %v199 = vsel %vm198, %v187, %v197
    %vm200 = vcmask 1046534
    %v201 = vsel %vm200, %v187, %v199
    %vm202 = vcmask 1047559
    %v203 = vsel %vm202, %v187, %v201
    %v204 = vsel %vm192, %v191, %v191
    %v205 = vsel %vm194, %v191, %v204
    %v206 = vsel %vm196, %v191, %v205
    %v207 = vsel %vm198, %v191, %v206
    %v208 = vsel %vm200, %v191, %v207
    %v209 = vsel %vm202, %v191, %v208
    %v212 = vadd.f32 %v30, %v203
    %v213 = vadd.f32 %v33, %v209
    %v214 = vmul.f32 %v104, 2.0
    %v215 = vmul.f32 %v177, 2.0
    %v216 = vsub.f32 %v212, %v214
    %v217 = vsub.f32 %v213, %v215
    %v218 = vmax.f32 %v216, 0.0
    %v219 = vmax.f32 %v217, 0.0
    %v220 = vsub.f32 0.05, %v218
    %v221 = vsub.f32 0.05, %v219
    %v222 = vmax.f32 %v220, 0.0
    %v223 = vmax.f32 %v221, 0.0
    %v224 = vsel %vm27, %v222, 0.0
    %225 = vadd.xlane.f32.xlu0 %v224
    %v226 = vpop.xlane.xlu0 %225
    %v227 = vsel %vm27, %v223, 0.0
    %228 = vadd.xlane.f32.xlu0 %v227
    %v229 = vpop.xlane.xlu0 %228
    %v230 = vadd.f32 %v226, %v229
    %v231 = vrot.slane %v230, 4
    %v232 = vadd.f32 %v230, %v231
    %v233 = vrot.slane %v232, 2
    %v234 = vadd.f32 %v232, %v233
    %v235 = vrot.slane %v234, 1
    %v236 = vadd.f32 %v234, %v235
    %v237 = vmul.f32 %v236, 0.0625
    %vm238 = vcmask 0
    %239 = vst.msk [vmem:[#allocation5] sm:$0x1] %vm238, %v237
    // Predicated region
    $region10: #{tpu_custom_call.1} parent=1 // pred_check
      _
    $region11: #{tpu_custom_call.1} parent=1 // pred_check_branch
      %241 = sbr.rel (0) target = $region13
    $region12: #{tpu_custom_call.1} parent=1 // pred_region
      %s243 = ssub.s32 16, 16
      %244 = vsyncadd [#allocation4], %s243
      %s246 = sshll.u32 [#allocation5], 4
      %s247 = int_to_ptr.vmem [resolvable:$true] %s246
      %249 = dma.vmem_to_hbm [thread:$0]  %s247, 16, %s1, [#allocation4]
    $region13: #{tpu_custom_call.1} parent=1 // pred_fallthru
      _
    // Predicated region
    $region14: #{tpu_custom_call.1} parent=1 // pred_check
      _
    $region15: #{tpu_custom_call.1} parent=1 // pred_check_branch
      %251 = sbr.rel (0) target = $region17
    $region16: #{tpu_custom_call.1} parent=1 // pred_region
      %252 = dma.done [#allocation4], 16
    $region17: #{tpu_custom_call.1} parent=1 // pred_fallthru
      _
    %253 = vsyncpa [#allocation3], 1
    %254 = vsyncpa [#allocation4], 1

</llo_original>
